<compile_context>
chip_gen: v6e
topology: v6e:2x2x1
jax: 0.10.0
libtpu: 0.0.40
codegen_flags: <defaults>
</compile_context>

<pallas_src>
import functools

import jax
import jax.numpy as jnp
from jax.experimental import pallas as pl
from jax.experimental.pallas import tpu as pltpu


# ---------------------------------------------------------------------------
# Kernel
# ---------------------------------------------------------------------------
def _bahdanau_kernel(L_valid, dec_ref, enc_ref, wdec_ref, wenc_ref, v_ref, out_ref):
    Bb, Lp, De = enc_ref.shape

    dec = dec_ref[...][:, 0, :]       # (Bb, Dd_in)        f32
    enc = enc_ref[...]                # (Bb, Lp, De)       bf16 (streamed half-width)
    wdec = wdec_ref[...]              # (Dd_in, Dd_pad)    bf16
    wenc = wenc_ref[...]              # (De,   Dd_pad)     bf16
    vvec = v_ref[...]                 # (1, Dd_pad)        f32 (zero-padded)

    # Decoder projection: computed once per batch row (torch repeats it L times).
    dec_proj = jnp.dot(dec.astype(jnp.bfloat16), wdec,
                       preferred_element_type=jnp.float32)            # (Bb, Dd_pad)

    # Encoder projection: one tall matmul over the folded (Bb*Lp) bf16 rows.
    # Lp is a multiple of 16 (bf16 sublane packing) so this fold is a free relayout.
    enc_rows = enc.reshape(Bb * Lp, De)
    enc_proj = jnp.dot(enc_rows, wenc,
                       preferred_element_type=jnp.float32)            # (Bb*Lp, Dd_pad)
    enc_proj = enc_proj.reshape(Bb, Lp, -1)

    energy = jnp.tanh(enc_proj + dec_proj[:, None, :])                # (Bb, Lp, Dd_pad) f32

    # att = energy . v  -> (Bb, Lp); VPU multiply + XLU lane reduction, no transpose,
    # no degenerate N=1 matmul. Padded Dd columns contribute tanh(0)*0 = 0.
    att = jnp.sum(energy * vvec, axis=-1)                             # (Bb, Lp)

    if Lp != L_valid:  # static: only when the wrapper padded L
        col = jax.lax.broadcasted_iota(jnp.int32, (Bb, Lp), 1)
        att = jnp.where(col < L_valid, att, -1e30)  # finite sentinel, no -inf NaNs

    # softmax over L (f32); exact reciprocal (denominator is only (Bb, 1)).
    m = jnp.max(att, axis=-1, keepdims=True)
    e = jnp.exp(att - m)
    denom = jnp.sum(e, axis=-1, keepdims=True)
    att_w = e / denom                                                 # (Bb, Lp)

    # att_out = att_w @ enc_states as a VPU multiply + axis-1 reduction
    # (padded enc rows are zero and their weights are ~0).
    out = jnp.sum(att_w[:, :, None] * enc.astype(jnp.float32), axis=1)  # (Bb, De) f32
    out_ref[...] = out[:, None, :].astype(out_ref.dtype)              # (Bb, 1, De)


# ---------------------------------------------------------------------------
# One-time parameter preprocessing (hoisted out of the per-call path)
# ---------------------------------------------------------------------------
def prepare_bahdanau_params(w, v, dec_input_dim=None):
    """Split / transpose / bf16-cast the fused Linear and lane-pad Dd to 128.

    w: (Dd, Dd_in + De) PyTorch nn.Linear weight (bias=False); v: (Dd,).
    Returns (wdecT, wencT, v_pad) to be passed to bahdanau_attention(). Call once.
    """
    Dd = w.shape[0]
    if dec_input_dim is None:
        dec_input_dim = Dd                     # module: dec_state dim == dec_hidden_dim
    De = w.shape[1] - dec_input_dim
    Dd_pad = ((Dd + 127) // 128) * 128         # lane-dense MXU N / vreg columns

    wdecT = jnp.zeros((dec_input_dim, Dd_pad), jnp.bfloat16)
    wdecT = wdecT.at[:, :Dd].set(w[:, :dec_input_dim].T.astype(jnp.bfloat16))
    wencT = jnp.zeros((De, Dd_pad), jnp.bfloat16)
    wencT = wencT.at[:, :Dd].set(w[:, dec_input_dim:].T.astype(jnp.bfloat16))
    v_pad = jnp.zeros((1, Dd_pad), jnp.float32).at[0, :Dd].set(v.astype(jnp.float32))
    return wdecT, wencT, v_pad


# ---------------------------------------------------------------------------
# VMEM footprint / block-size selection
# ---------------------------------------------------------------------------
def _vmem_footprint(Lp, De, Dd_in, Dd_pad):
    # Shared residents: bf16 weights + f32 v (double-buffered broadcast blocks).
    weight_bytes = 2 * ((Dd_in + De) * Dd_pad * 2 + Dd_pad * 4)
    # Per-batch-row residents: double-buffered enc/dec/out blocks plus the large
    # f32 intermediates the body creates (enc_proj, energy, weighted-sum product).
    per_row = (2 * Lp * De * 2            # enc block (bf16), x2 buffers
               + 2 * Lp * Dd_pad * 4      # enc_proj + energy (f32)
               + Lp * De * 4              # att_w * enc product (f32)
               + 2 * (Dd_in + De) * 4)    # dec / out blocks (tiny)
    return weight_bytes, per_row


def _choose_block_b(B, Lp, De, Dd_in, Dd_pad, vmem_budget_bytes):
    weight_bytes, per_row = _vmem_footprint(Lp, De, Dd_in, Dd_pad)
    avail = max(vmem_budget_bytes - weight_bytes, per_row)
    max_rows = max(1, int(avail // per_row))
    block_b = min(B, max_rows, 32)
    if B >= 2:
        # Keep >=2 grid blocks so the "parallel" batch axis shards across v7x's 2 TCs.
        block_b = min(block_b, pl.cdiv(B, 2))
    return max(1, int(block_b))


# ---------------------------------------------------------------------------
# Per-call wrapper
# ---------------------------------------------------------------------------
def bahdanau_attention(dec_state, enc_states, att_mask, params, *,
                       block_b=None, vmem_budget_bytes=40 * 1024 * 1024):
    """dec_state: (B, 1, Dd_in) f32, enc_states: (B, L, De) f32, att_mask: (B, L),
    params: output of prepare_bahdanau_params(w, v). Returns (B, 1, De) f32."""
    del att_mask  # the reference PyTorch forward never reads att_mask
    wdecT, wencT, v_pad = params
    B, L, De = enc_states.shape
    Dd_in = dec_state.shape[-1]
    Dd_pad = wdecT.shape[1]
    assert wdecT.shape[0] == Dd_in and wencT.shape[0] == De

    # Single fused HBM pass over enc: pad L to a multiple of 16 (bf16 sublane packing)
    # and cast to bf16 (halves the kernel's DMA bytes for the dominant tensor).
    Lp = ((L + 15) // 16) * 16
    if Lp != L:
        enc_p = jnp.pad(enc_states, ((0, 0), (0, Lp - L), (0, 0))).astype(jnp.bfloat16)
    else:
        enc_p = enc_states.astype(jnp.bfloat16)
    dec_in = dec_state.astype(jnp.float32)               # (B, 1, Dd_in), tiny

    if block_b is None:
        block_b = _choose_block_b(B, Lp, De, Dd_in, Dd_pad, vmem_budget_bytes)
    grid_b = pl.cdiv(B, block_b)

    weight_bytes, per_row = _vmem_footprint(Lp, De, Dd_in, Dd_pad)
    needed = weight_bytes + block_b * per_row
    vmem_limit = int(min(max(needed + (4 << 20), 16 << 20), 96 << 20))

    cost = pl.CostEstimate(
        flops=int(2 * B * Lp * De * Dd_pad          # encoder projection
                  + 2 * B * Dd_in * Dd_pad          # decoder projection
                  + 2 * B * Lp * Dd_pad             # energy . v
                  + 2 * B * Lp * De),               # weighted sum
        transcendentals=int(B * Lp * Dd_pad + B * Lp),   # tanh + exp
        bytes_accessed=int(B * Lp * De * 2 + B * Dd_in * 4
                           + (Dd_in + De) * Dd_pad * 2 + Dd_pad * 4
                           + B * De * 4),
    )

    kernel = functools.partial(_bahdanau_kernel, L)

    out = pl.pallas_call(
        kernel,
        out_shape=jax.ShapeDtypeStruct((B, 1, De), jnp.float32),
        grid_spec=pltpu.PrefetchScalarGridSpec(
            num_scalar_prefetch=0,
            grid=(grid_b,),
            in_specs=[
                pl.BlockSpec((block_b, 1, Dd_in), lambda b: (b, 0, 0)),   # dec_state
                pl.BlockSpec((block_b, Lp, De), lambda b: (b, 0, 0)),     # enc (bf16)
                pl.BlockSpec((Dd_in, Dd_pad), lambda b: (0, 0)),          # W_dec^T (shared)
                pl.BlockSpec((De, Dd_pad), lambda b: (0, 0)),             # W_enc^T (shared)
                pl.BlockSpec((1, Dd_pad), lambda b: (0, 0)),              # v (shared)
            ],
            out_specs=pl.BlockSpec((block_b, 1, De), lambda b: (b, 0, 0)),
        ),
        compiler_params=pltpu.CompilerParams(
            dimension_semantics=("parallel",),
            vmem_limit_bytes=vmem_limit,
        ),
        cost_estimate=cost,
    )(dec_in, enc_p, wdecT, wencT, v_pad)
    return out                                            # (B, 1, De)


# ---------------------------------------------------------------------------
# References
# ---------------------------------------------------------------------------
def _reference_f32(dec_state, enc_states, w, v):
    """Pure-JAX f32 mirror of the PyTorch forward."""
    B, L, _ = enc_states.shape
    dec_rep = jnp.broadcast_to(dec_state, (B, L, dec_state.shape[-1]))
    cat = jnp.concatenate([dec_rep, enc_states], axis=-1)            # (B, L, Dd_in+De)
    energy = jnp.tanh(jnp.einsum('blf,df->bld', cat, w))             # (B, L, Dd)
    att = jnp.einsum('bld,d->bl', energy, v)                         # (B, L)
    att_w = jax.nn.softmax(att, axis=1)
    return jnp.einsum('bl,ble->be', att_w, enc_states)[:, None, :]   # (B, 1, De)


def _reference_matched(dec_state, enc_states, w, v):
    """Same math with the kernel's bf16 operand rounding (tight check)."""
    Dd_in = dec_state.shape[-1]
    rnd = lambda x: x.astype(jnp.bfloat16).astype(jnp.float32)
    wdecT = rnd(w[:, :Dd_in].T)
    wencT = rnd(w[:, Dd_in:].T)
    dec = rnd(dec_state[:, 0, :])
    enc = rnd(enc_states)                                  # enc streamed as bf16
    energy = jnp.tanh(jnp.einsum('ble,ed->bld', enc, wencT) + (dec @ wdecT)[:, None, :])
    att = jnp.einsum('bld,d->bl', energy, v)
    att_w = jax.nn.softmax(att, axis=1)
    return jnp.einsum('bl,ble->be', att_w, enc)[:, None, :]


if __name__ == "__main__":
    key = jax.random.PRNGKey(0)
    B, L = 2, 10
    dec_hidden, enc_hidden = 32, 48

    k1, k2, k3, k4 = jax.random.split(key, 4)
    dec_state = jax.random.normal(k1, (B, 1, dec_hidden), dtype=jnp.float32)
    enc_states = jax.random.normal(k2, (B, L, enc_hidden), dtype=jnp.float32)
    # att_mask is accepted for interface parity; the module's forward ignores it.
    att_mask = jnp.concatenate(
        [jnp.ones((B, L - 2), jnp.float32), jnp.zeros((B, 2), jnp.float32)], axis=1)
    # nn.Linear(dec+enc -> dec, bias=False) weight and the v parameter
    w = jax.random.normal(k3, (dec_hidden, dec_hidden + enc_hidden), jnp.float32) * 0.1
    v = jax.random.uniform(k4, (dec_hidden,), dtype=jnp.float32)

    # One-time parameter preprocessing (hoisted out of the per-call path).
    params = prepare_bahdanau_params(w, v, dec_input_dim=dec_hidden)

    out = bahdanau_attention(dec_state, enc_states, att_mask, params)
    out = jax.block_until_ready(out)

    assert out.shape == (B, 1, enc_hidden)
    assert bool(jnp.all(jnp.isfinite(out)))

    ref_tight = _reference_matched(dec_state, enc_states, w, v)
    ref_f32 = _reference_f32(dec_state, enc_states, w, v)
    assert jnp.allclose(out, ref_tight, atol=1e-2, rtol=1e-2), "mismatch vs matched-precision reference"
    assert jnp.allclose(out, ref_f32, atol=5e-2, rtol=5e-2), "mismatch vs f32 reference"

    print("KERNEL_OK")
</pallas_src>

<mosaic_0001>
module attributes {stable_mosaic.version = 11 : i64} {
  func.func @_bahdanau_kernel(%arg0: i32, %arg1: memref<1x1x32xf32, #tpu.memory_space<vmem>>, %arg2: memref<1x16x48xbf16, #tpu.memory_space<vmem>>, %arg3: memref<32x128xbf16, #tpu.memory_space<vmem>>, %arg4: memref<48x128xbf16, #tpu.memory_space<vmem>>, %arg5: memref<1x128xf32, #tpu.memory_space<vmem>>, %arg6: memref<1x1x48xf32, #tpu.memory_space<vmem>>) attributes {dimension_semantics = [#tpu.dimension_semantics<parallel>], iteration_bounds = array<i64: 2>, scalar_prefetch = 0 : i64, scratch_operands = 0 : i64, tpu.core_type = #tpu.core_type<tc>, window_params = [{transform_indices = @transform_0, window_bounds = array<i64: 1, 1, 32>}, {transform_indices = @transform_1, window_bounds = array<i64: 1, 16, 48>}, {pipeline_mode = #tpu.pipeline_mode<synchronous>, transform_indices = @transform_2, window_bounds = array<i64: 32, 128>}, {pipeline_mode = #tpu.pipeline_mode<synchronous>, transform_indices = @transform_3, window_bounds = array<i64: 48, 128>}, {pipeline_mode = #tpu.pipeline_mode<synchronous>, transform_indices = @transform_4, window_bounds = array<i64: 1, 128>}, {transform_indices = @transform_5, window_bounds = array<i64: 1, 1, 48>}]} {
    %c0 = arith.constant 0 : index
    %c0_0 = arith.constant 0 : index
    %c0_1 = arith.constant 0 : index
    %0 = vector.load %arg1[%c0, %c0_0, %c0_1] : memref<1x1x32xf32, #tpu.memory_space<vmem>>, vector<1x1x32xf32>
    %1 = vector.shape_cast %0 : vector<1x1x32xf32> to vector<1x32xf32>
    %c0_2 = arith.constant 0 : index
    %c0_3 = arith.constant 0 : index
    %c0_4 = arith.constant 0 : index
    %2 = vector.load %arg2[%c0_2, %c0_3, %c0_4] : memref<1x16x48xbf16, #tpu.memory_space<vmem>>, vector<1x16x48xbf16>
    %c0_5 = arith.constant 0 : index
    %c0_6 = arith.constant 0 : index
    %3 = vector.load %arg3[%c0_5, %c0_6] : memref<32x128xbf16, #tpu.memory_space<vmem>>, vector<32x128xbf16>
    %c0_7 = arith.constant 0 : index
    %c0_8 = arith.constant 0 : index
    %4 = vector.load %arg4[%c0_7, %c0_8] : memref<48x128xbf16, #tpu.memory_space<vmem>>, vector<48x128xbf16>
    %c0_9 = arith.constant 0 : index
    %c0_10 = arith.constant 0 : index
    %5 = vector.load %arg5[%c0_9, %c0_10] : memref<1x128xf32, #tpu.memory_space<vmem>>, vector<1x128xf32>
    %6 = arith.truncf %1 : vector<1x32xf32> to vector<1x32xbf16>
    %cst = arith.constant dense<0.000000e+00> : vector<1x128xf32>
    %7 = tpu.matmul %6, %3, %cst {dimension_numbers = #tpu.dot_dimension_numbers<[1], [0], [0], [1], [0, 0, 1, 1], [], []>} : vector<1x32xbf16>, vector<32x128xbf16>, vector<1x128xf32> -> vector<1x128xf32>
    %8 = vector.shape_cast %2 : vector<1x16x48xbf16> to vector<16x48xbf16>
    %cst_11 = arith.constant dense<0.000000e+00> : vector<16x128xf32>
    %9 = tpu.matmul %8, %4, %cst_11 {dimension_numbers = #tpu.dot_dimension_numbers<[1], [0], [0], [1], [0, 0, 1, 1], [], []>} : vector<16x48xbf16>, vector<48x128xbf16>, vector<16x128xf32> -> vector<16x128xf32>
    %10 = vector.shape_cast %9 : vector<16x128xf32> to vector<1x16x128xf32>
    %11 = vector.shape_cast %7 : vector<1x128xf32> to vector<1x1x128xf32>
    %12 = vector.broadcast %11 : vector<1x1x128xf32> to vector<1x16x128xf32>
    %13 = arith.addf %10, %12 : vector<1x16x128xf32>
    %14 = math.tanh %13 : vector<1x16x128xf32>
    %15 = vector.shape_cast %5 : vector<1x128xf32> to vector<1x1x128xf32>
    %16 = vector.broadcast %15 : vector<1x1x128xf32> to vector<1x16x128xf32>
    %17 = arith.mulf %14, %16 : vector<1x16x128xf32>
    %cst_12 = arith.constant dense<0.000000e+00> : vector<1x16xf32>
    %18 = vector.multi_reduction <add>, %17, %cst_12 [2] : vector<1x16x128xf32> to vector<1x16xf32>
    %19 = tpu.iota {dimensions = array<i32: 1>} : vector<1x16xi32>
    %c10_i32 = arith.constant 10 : i32
    %20 = vector.broadcast %c10_i32 : i32 to vector<1x16xi32>
    %21 = arith.cmpi slt, %19, %20 : vector<1x16xi32>
    %cst_13 = arith.constant -1.000000e+30 : f32
    %22 = vector.broadcast %cst_13 : f32 to vector<1x16xf32>
    %23 = arith.select %21, %18, %22 : vector<1x16xi1>, vector<1x16xf32>
    %cst_14 = arith.constant dense<0xFF800000> : vector<1xf32>
    %24 = vector.multi_reduction <maximumf>, %23, %cst_14 [1] : vector<1x16xf32> to vector<1xf32>
    %25 = vector.shape_cast %24 : vector<1xf32> to vector<1x1xf32>
    %26 = vector.broadcast %25 : vector<1x1xf32> to vector<1x16xf32>
    %27 = arith.subf %23, %26 : vector<1x16xf32>
    %28 = math.exp %27 : vector<1x16xf32>
    %cst_15 = arith.constant dense<0.000000e+00> : vector<1xf32>
    %29 = vector.multi_reduction <add>, %28, %cst_15 [1] : vector<1x16xf32> to vector<1xf32>
    %30 = vector.shape_cast %29 : vector<1xf32> to vector<1x1xf32>
    %31 = vector.broadcast %30 : vector<1x1xf32> to vector<1x16xf32>
    %32 = arith.divf %28, %31 : vector<1x16xf32>
    %33 = vector.shape_cast %32 : vector<1x16xf32> to vector<1x16x1xf32>
    %34 = arith.extf %2 : vector<1x16x48xbf16> to vector<1x16x48xf32>
    %35 = vector.broadcast %33 : vector<1x16x1xf32> to vector<1x16x48xf32>
    %36 = arith.mulf %35, %34 : vector<1x16x48xf32>
    %cst_16 = arith.constant dense<0.000000e+00> : vector<1x48xf32>
    %37 = vector.multi_reduction <add>, %36, %cst_16 [1] : vector<1x16x48xf32> to vector<1x48xf32>
    %38 = vector.shape_cast %37 : vector<1x48xf32> to vector<1x1x48xf32>
    %c0_17 = arith.constant 0 : index
    %c0_18 = arith.constant 0 : index
    %c0_19 = arith.constant 0 : index
    %39 = vector.load %arg6[%c0_17, %c0_18, %c0_19] : memref<1x1x48xf32, #tpu.memory_space<vmem>>, vector<1x1x48xf32>
    tpu.vector_store %arg6[%c0_17, %c0_18, %c0_19], %38 {strides = array<i32>} : memref<1x1x48xf32, #tpu.memory_space<vmem>>, vector<1x1x48xf32>,
    return
  }
  func.func @transform_0(%arg0: i32) -> (i32, i32, i32) {
    %c0_i32 = arith.constant 0 : i32
    %c0_i32_0 = arith.constant 0 : i32
    %c0_i32_1 = arith.constant 0 : i32
    return %arg0, %c0_i32, %c0_i32_0 : i32, i32, i32
  }
  func.func @transform_1(%arg0: i32) -> (i32, i32, i32) {
    %c0_i32 = arith.constant 0 : i32
    %c0_i32_0 = arith.constant 0 : i32
    %c0_i32_1 = arith.constant 0 : i32
    return %arg0, %c0_i32, %c0_i32_0 : i32, i32, i32
  }
  func.func @transform_2(%arg0: i32) -> (i32, i32) {
    %c0_i32 = arith.constant 0 : i32
    %c0_i32_0 = arith.constant 0 : i32
    %c0_i32_1 = arith.constant 0 : i32
    return %c0_i32, %c0_i32_0 : i32, i32
  }
  func.func @transform_3(%arg0: i32) -> (i32, i32) {
    %c0_i32 = arith.constant 0 : i32
    %c0_i32_0 = arith.constant 0 : i32
    %c0_i32_1 = arith.constant 0 : i32
    return %c0_i32, %c0_i32_0 : i32, i32
  }
  func.func @transform_4(%arg0: i32) -> (i32, i32) {
    %c0_i32 = arith.constant 0 : i32
    %c0_i32_0 = arith.constant 0 : i32
    %c0_i32_1 = arith.constant 0 : i32
    return %c0_i32, %c0_i32_0 : i32, i32
  }
  func.func @transform_5(%arg0: i32) -> (i32, i32, i32) {
    %c0_i32 = arith.constant 0 : i32
    %c0_i32_0 = arith.constant 0 : i32
    %c0_i32_1 = arith.constant 0 : i32
    return %arg0, %c0_i32, %c0_i32_0 : i32, i32, i32
  }
}

</mosaic_0001>

<llo_original>
// kernel: tpu_custom_call.1
$region0: #{tpu_custom_call.1}
  #allocation0 [shape = 'u32[]', space=smem, size = 0x4, offset = 0x4, fixed_abs, tag = 'smem constant byte address 0x4 - core index']
  #allocation1 [shape = 'u32[144,128]{1,0:T(1,128)}', space=vmem, size = 0x12000, scoped, tag = 'internal scratch']
  %s0 = inlined_call_operand.hbm [shape: f32[2,1,32], index: 0, kind: input, shape index: {}]
  %s1 = inlined_call_operand.hbm [shape: bf16[2,16,48], index: 1, kind: input, shape index: {}]
  %s2 = inlined_call_operand.hbm [shape: bf16[32,128], index: 2, kind: input, shape index: {}]
  %s3 = inlined_call_operand.hbm [shape: bf16[48,128], index: 3, kind: input, shape index: {}]
  %s4 = inlined_call_operand.vmem [shape: f32[1,128], index: 4, kind: input, shape index: {}]
  %s5 = inlined_call_operand.hbm [shape: f32[2,1,48], index: 5, kind: output, shape index: {}]
  %s6 = sld [smem:[#allocation0]]
  $region69: #{tpu_custom_call.1} parent=0
    _
  %s8 = ssub.s32 1, %s6
  %s9 = scalar_select 0, %s8, %s6
  $region1: #{tpu_custom_call.1} parent=0
    #allocation2 [shape = 'u8[1024]{0}', space=vmem, size = 0x400, scoped, tag = 'input window, operand 0']
    #allocation3 [shape = 's32[2]{0}', space=sflag, size = 0x8, scoped, tag = 'scoped memory for tpu_custom_call.1']
    #allocation4 [shape = 's32[2]{0}', space=sflag, size = 0x8, scoped, tag = 'scoped memory for tpu_custom_call.1']
    #allocation5 [shape = 'u8[8192]{0}', space=vmem, size = 0x2000, scoped, tag = 'input window, operand 1']
    #allocation6 [shape = 's32[2]{0}', space=sflag, size = 0x8, scoped, tag = 'scoped memory for tpu_custom_call.1']
    #allocation7 [shape = 'u8[8192]{0}', space=vmem, size = 0x2000, scoped, tag = 'input window, operand 2, single buffered']
    #allocation8 [shape = 'u8[12288]{0}', space=vmem, size = 0x3000, scoped, tag = 'input window, operand 3, single buffered']
    #allocation9 [shape = 's32[1]{0}', space=sflag, size = 0x4, scoped, tag = 'scoped memory for tpu_custom_call.1']
    #allocation10 [shape = 'u8[1024]{0}', space=vmem, size = 0x400, scoped, tag = 'output window, operand 0']
    %10 = vsyncpa [#allocation3], 0
    %s11 = scalar_lea.sflag [#allocation3], 1
    %12 = vsyncpa %s11, 0
    %13 = vsyncpa [#allocation6], 0
    %s14 = scalar_lea.sflag [#allocation6], 1
    %15 = vsyncpa %s14, 0
    %16 = vsyncpa [#allocation9], 0
    %17 = vsyncpa [#allocation4], 0
    %s18 = scalar_lea.sflag [#allocation4], 1
    %19 = vsyncpa %s18, 0
    loop: start=0, step=1, limit=4
    $region2: #{tpu_custom_call.1} parent=1 // loop_pre_header
      _
    $region3: #{tpu_custom_call.1} parent=1 // loop_header
      %s21 = sphi 0, %s25
      %p22 = scmp.ge.s32.totalorder %s21, 4
      %s31 = sphi 0, %s33
      %s34 = sphi 0, %s31
      %s35 = sphi 0, %s34
      %s51 = sphi 0, %s35
      %s57 = sphi 0, %s59
      %s60 = sphi 0, %s57
      %s61 = sphi 0, %s60
      %s77 = sphi 0, %s61
      %s81 = sphi 0, %s81
      %s83 = sphi 0, %s81
      %s84 = sphi 0, %s83
      %s98 = sphi 0, %s84
      %s102 = sphi 0, %s102
      %s104 = sphi 0, %s102
      %s105 = sphi 0, %s104
      %s119 = sphi 0, %s105
      %s123 = sphi 0, %s123
      %s125 = sphi 0, %s123
      %s126 = sphi 0, %s125
      %s140 = sphi 0, %s126
      %s146 = sphi 0, %s148
      %s149 = sphi 0, %s146
      %s150 = sphi 0, %s149
      %s166 = sphi 0, %s150
    $region4: #{tpu_custom_call.1} parent=1 // loop_header_branch
      %24 = sbr.rel (%p22) target = $region8
    $region5: #{tpu_custom_call.1} parent=1 // loop_body
      %s26 = ssub.s32 %s21, 1
      %s27 = ssub.s32 %s21, 2
      %s28 = sadd.s32 %s21, 1
      %s29 = ssub.s32 %s21, %s28
      %p30 = scmp.eq.s32.totalorder %s29, 0
      %s32 = sadd.s32 %s31, 1
      %s33 = scalar_select %p30, %s31, %s32
      %p36 = pneg %p30
      %p37 = scmp.eq.s32.totalorder %s21, 1
      %p38 = por %p36, %p37
      %p39 = scmp.ne.s32.totalorder %s31, %s34
      %p40 = scmp.eq.s32.totalorder %s21, 0
      %p41 = por %p39, %p40
      %p42 = scmp.ne.s32.totalorder %s31, %s34
      %p43 = scmp.eq.s32.totalorder %s26, 1
      %p44 = por %p42, %p43
      %p45 = scmp.ne.s32.totalorder %s34, %s35
      %p46 = scmp.eq.s32.totalorder %s26, 0
      %p47 = por %p45, %p46
      %p48 = scmp.ne.s32.totalorder %s34, %s35
      %p49 = scmp.eq.s32.totalorder %s27, 1
      %p50 = por %p48, %p49
      %p52 = scmp.ne.s32.totalorder %s35, %s51
      %p53 = scmp.eq.s32.totalorder %s27, 0
      %p54 = por %p52, %p53
      %s55 = ssub.s32 %s21, %s28
      %p56 = scmp.eq.s32.totalorder %s55, 0
      %s58 = sadd.s32 %s57, 1
      %s59 = scalar_select %p56, %s57, %s58
      %p62 = pneg %p56
      %p63 = scmp.eq.s32.totalorder %s21, 1
      %p64 = por %p62, %p63
      %p65 = scmp.ne.s32.totalorder %s57, %s60
      %p66 = scmp.eq.s32.totalorder %s21, 0
      %p67 = por %p65, %p66
      %p68 = scmp.ne.s32.totalorder %s57, %s60
      %p69 = scmp.eq.s32.totalorder %s26, 1
      %p70 = por %p68, %p69
      %p71 = scmp.ne.s32.totalorder %s60, %s61
      %p72 = scmp.eq.s32.totalorder %s26, 0
      %p73 = por %p71, %p72
      %p74 = scmp.ne.s32.totalorder %s60, %s61
      %p75 = scmp.eq.s32.totalorder %s27, 1
      %p76 = por %p74, %p75
      %p78 = scmp.ne.s32.totalorder %s61, %s77
      %p79 = scmp.eq.s32.totalorder %s27, 0
      %p80 = por %p78, %p79
      %s82 = sadd.s32 %s81, 1
      %p85 = scmp.eq.s32.totalorder %s21, 1
      %p86 = scmp.ne.s32.totalorder %s81, %s83
      %p87 = scmp.eq.s32.totalorder %s21, 0
      %p88 = por %p86, %p87
      %p89 = scmp.ne.s32.totalorder %s81, %s83
      %p90 = scmp.eq.s32.totalorder %s26, 1
      %p91 = por %p89, %p90
      %p92 = scmp.ne.s32.totalorder %s83, %s84
      %p93 = scmp.eq.s32.totalorder %s26, 0
      %p94 = por %p92, %p93
      %p95 = scmp.ne.s32.totalorder %s83, %s84
      %p96 = scmp.eq.s32.totalorder %s27, 1
      %p97 = por %p95, %p96
      %p99 = scmp.ne.s32.totalorder %s84, %s98
      %p100 = scmp.eq.s32.totalorder %s27, 0
      %p101 = por %p99, %p100
      %s103 = sadd.s32 %s102, 1
      %p106 = scmp.eq.s32.totalorder %s21, 1
      %p107 = scmp.ne.s32.totalorder %s102, %s104
      %p108 = scmp.eq.s32.totalorder %s21, 0
      %p109 = por %p107, %p108
      %p110 = scmp.ne.s32.totalorder %s102, %s104
      %p111 = scmp.eq.s32.totalorder %s26, 1
      %p112 = por %p110, %p111
      %p113 = scmp.ne.s32.totalorder %s104, %s105
      %p114 = scmp.eq.s32.totalorder %s26, 0
      %p115 = por %p113, %p114
      %p116 = scmp.ne.s32.totalorder %s104, %s105
      %p117 = scmp.eq.s32.totalorder %s27, 1
      %p118 = por %p116, %p117
      %p120 = scmp.ne.s32.totalorder %s105, %s119
      %p121 = scmp.eq.s32.totalorder %s27, 0
      %p122 = por %p120, %p121
      %s124 = sadd.s32 %s123, 1
      %p127 = scmp.eq.s32.totalorder %s21, 1
      %p128 = scmp.ne.s32.totalorder %s123, %s125
      %p129 = scmp.eq.s32.totalorder %s21, 0
      %p130 = por %p128, %p129
      %p131 = scmp.ne.s32.totalorder %s123, %s125
      %p132 = scmp.eq.s32.totalorder %s26, 1
      %p133 = por %p131, %p132
      %p134 = scmp.ne.s32.totalorder %s125, %s126
      %p135 = scmp.eq.s32.totalorder %s26, 0
      %p136 = por %p134, %p135
      %p137 = scmp.ne.s32.totalorder %s125, %s126
      %p138 = scmp.eq.s32.totalorder %s27, 1
      %p139 = por %p137, %p138
      %p141 = scmp.ne.s32.totalorder %s126, %s140
      %p142 = scmp.eq.s32.totalorder %s27, 0
      %p143 = por %p141, %p142
      %s144 = ssub.s32 %s21, %s28
      %p145 = scmp.eq.s32.totalorder %s144, 0
      %s147 = sadd.s32 %s146, 1
      %s148 = scalar_select %p145, %s146, %s147
      %p151 = pneg %p145
      %p152 = scmp.eq.s32.totalorder %s21, 1
      %p153 = por %p151, %p152
      %p154 = scmp.ne.s32.totalorder %s146, %s149
      %p155 = scmp.eq.s32.totalorder %s21, 0
      %p156 = por %p154, %p155
      %p157 = scmp.ne.s32.totalorder %s146, %s149
      %p158 = scmp.eq.s32.totalorder %s26, 1
      %p159 = por %p157, %p158
      %p160 = scmp.ne.s32.totalorder %s149, %s150
      %p161 = scmp.eq.s32.totalorder %s26, 0
      %p162 = por %p160, %p161
      %p163 = scmp.ne.s32.totalorder %s149, %s150
      %p164 = scmp.eq.s32.totalorder %s27, 1
      %p165 = por %p163, %p164
      %p167 = scmp.ne.s32.totalorder %s150, %s166
      %p168 = scmp.eq.s32.totalorder %s27, 0
      %p169 = por %p167, %p168
      %p170 = scmp.le.s32.totalorder 1, %s21
      %p171 = scmp.lt.s32.totalorder %s21, 3
      %p172 = pnand %p170, %p171
      %p173 = pneg %p172
      // Predicated region
      $region9: #{tpu_custom_call.1} parent=5 // pred_check
        _
      $region10: #{tpu_custom_call.1} parent=5 // pred_check_branch
        %175 = sbr.rel (%p172) target = $region12
      $region11: #{tpu_custom_call.1} parent=5 // pred_region
        %s176 = ssub.s32 %s21, 1
        // Predicated region
        $region13: #{tpu_custom_call.1} parent=11 // pred_check
          %p177 = pneg %p94
        $region14: #{tpu_custom_call.1} parent=11 // pred_check_branch
          %179 = sbr.rel (%p177) target = $region16
        $region15: #{tpu_custom_call.1} parent=11 // pred_region
          %s181 = ssub.s32 256, 256
          %182 = vsyncadd [#allocation6], %s181
          %s183 = sshll.u32 [#allocation7], 4
          %s184 = int_to_ptr.vmem [resolvable:$true] %s183
          %189 = dma.hbm_to_vmem [thread:$0]  %s2, 256, %s184, [#allocation6], 64, 64, 4
        $region16: #{tpu_custom_call.1} parent=11 // pred_fallthru
          _
        // Predicated region
        $region17: #{tpu_custom_call.1} parent=11 // pred_check
          %p190 = pneg %p115
        $region18: #{tpu_custom_call.1} parent=11 // pred_check_branch
          %192 = sbr.rel (%p190) target = $region20
        $region19: #{tpu_custom_call.1} parent=11 // pred_region
          %s194 = ssub.s32 384, 384
          %195 = vsyncadd [#allocation9], %s194
          %s196 = sshll.u32 [#allocation8], 4
          %s197 = int_to_ptr.vmem [resolvable:$true] %s196
          %202 = dma.hbm_to_vmem [thread:$0]  %s3, 384, %s197, [#allocation9], 64, 64, 4
        $region20: #{tpu_custom_call.1} parent=11 // pred_fallthru
          _
        // Predicated region
        $region21: #{tpu_custom_call.1} parent=11 // pred_check
          %p203 = pneg %p136
        $region22: #{tpu_custom_call.1} parent=11 // pred_check_branch
          %205 = sbr.rel (%p203) target = $region24
        $region23: #{tpu_custom_call.1} parent=11 // pred_region
          _
        $region24: #{tpu_custom_call.1} parent=11 // pred_fallthru
          _
      $region12: #{tpu_custom_call.1} parent=5 // pred_fallthru
        _
      %p206 = scmp.lt.s32.totalorder %s21, 2
      // Predicated region
      $region25: #{tpu_custom_call.1} parent=5 // pred_check
        %p207 = pneg %p206
      $region26: #{tpu_custom_call.1} parent=5 // pred_check_branch
        %209 = sbr.rel (%p207) target = $region28
      $region27: #{tpu_custom_call.1} parent=5 // pred_region
        // Predicated region
        $region29: #{tpu_custom_call.1} parent=27 // pred_check
          %p210 = pneg %p41
        $region30: #{tpu_custom_call.1} parent=27 // pred_check_branch
          %212 = sbr.rel (%p210) target = $region32
        $region31: #{tpu_custom_call.1} parent=27 // pred_region
          %s213 = sand.u32 %s31, 1
          %s214 = scalar_lea.sflag [#allocation3], %s213
          %s215 = sand.u32 %s31, 1
          %s216 = scalar_lea.vmem [#allocation2], %s215
          %s218 = ssub.s32 16, 16
          %219 = vsyncadd %s214, %s218
          %s220 = smul.addr %s21, 16
          %s221 = scalar_lea.hbm %s0, %s220
          %s223 = sshll.u32 %s216, 4
          %s224 = int_to_ptr.vmem [resolvable:$true] %s223
          %226 = dma.hbm_to_vmem [thread:$0]  %s221, 16, %s224, %s214
        $region32: #{tpu_custom_call.1} parent=27 // pred_fallthru
          _
        // Predicated region
        $region33: #{tpu_custom_call.1} parent=27 // pred_check
          %p227 = pneg %p67
        $region34: #{tpu_custom_call.1} parent=27 // pred_check_branch
          %229 = sbr.rel (%p227) target = $region36
        $region35: #{tpu_custom_call.1} parent=27 // pred_region
          %s230 = sand.u32 %s21, 1
          %s231 = scalar_lea.sflag [#allocation6], %s230
          %s232 = sand.u32 %s57, 1
          %s233 = smul.addr %s232, 8
          %s234 = scalar_lea.vmem [#allocation5], %s233
          %s236 = ssub.s32 128, 128
          %237 = vsyncadd %s231, %s236
          %s238 = smul.addr %s21, 2
          %s239 = smul.addr %s238, 64
          %s240 = scalar_lea.hbm %s1, %s239
          %s241 = sshll.u32 %s234, 4
          %s242 = int_to_ptr.vmem [resolvable:$true] %s241
          %247 = dma.hbm_to_vmem [thread:$0]  %s240, 128, %s242, %s231, 64, 64, 4
        $region36: #{tpu_custom_call.1} parent=27 // pred_fallthru
          _
      $region28: #{tpu_custom_call.1} parent=5 // pred_fallthru
        _
      %p248 = scmp.le.s32.totalorder 1, %s21
      %p249 = scmp.lt.s32.totalorder %s21, 3
      %p250 = pnand %p248, %p249
      %p251 = pneg %p250
      // Predicated region
      $region37: #{tpu_custom_call.1} parent=5 // pred_check
        _
      $region38: #{tpu_custom_call.1} parent=5 // pred_check_branch
        %253 = sbr.rel (%p250) target = $region40
      $region39: #{tpu_custom_call.1} parent=5 // pred_region
        %s254 = ssub.s32 %s21, 1
        %s255 = sand.u32 %s34, 1
        %s256 = scalar_lea.sflag [#allocation3], %s255
        %s257 = sand.u32 %s34, 1
        %s258 = scalar_lea.vmem [#allocation2], %s257
        // Predicated region
        $region41: #{tpu_custom_call.1} parent=39 // pred_check
          %p259 = pneg %p47
        $region42: #{tpu_custom_call.1} parent=39 // pred_check_branch
          %261 = sbr.rel (%p259) target = $region44
        $region43: #{tpu_custom_call.1} parent=39 // pred_region
          %262 = dma.done %s256, 16
        $region44: #{tpu_custom_call.1} parent=39 // pred_fallthru
          _
        %s263 = sand.u32 %s26, 1
        %s264 = scalar_lea.sflag [#allocation6], %s263
        %s265 = sand.u32 %s60, 1
        %s266 = smul.addr %s265, 8
        %s267 = scalar_lea.vmem [#allocation5], %s266
        // Predicated region
        $region45: #{tpu_custom_call.1} parent=39 // pred_check
          %p268 = pneg %p73
        $region46: #{tpu_custom_call.1} parent=39 // pred_check_branch
          %270 = sbr.rel (%p268) target = $region48
        $region47: #{tpu_custom_call.1} parent=39 // pred_region
          %271 = dma.done %s264, 128
        $region48: #{tpu_custom_call.1} parent=39 // pred_fallthru
          _
        // Predicated region
        $region49: #{tpu_custom_call.1} parent=39 // pred_check
          %p272 = pneg %p94
        $region50: #{tpu_custom_call.1} parent=39 // pred_check_branch
          %274 = sbr.rel (%p272) target = $region52
        $region51: #{tpu_custom_call.1} parent=39 // pred_region
          %275 = dma.done [#allocation6], 256
        $region52: #{tpu_custom_call.1} parent=39 // pred_fallthru
          _
        // Predicated region
        $region53: #{tpu_custom_call.1} parent=39 // pred_check
          %p276 = pneg %p115
        $region54: #{tpu_custom_call.1} parent=39 // pred_check_branch
          %278 = sbr.rel (%p276) target = $region56
        $region55: #{tpu_custom_call.1} parent=39 // pred_region
          %279 = dma.done [#allocation9], 384
        $region56: #{tpu_custom_call.1} parent=39 // pred_fallthru
          _
        %s280 = sand.u32 %s34, 1
        %s281 = scalar_lea.sflag [#allocation3], %s280
        %s282 = sand.u32 %s34, 1
        %s283 = scalar_lea.vmem [#allocation2], %s282
        %p284 = pneg %p47
        %p285 = pneg %p44
        %s286 = sand.u32 %s26, 1
        %s287 = scalar_lea.sflag [#allocation6], %s286
        %s288 = sand.u32 %s60, 1
        %s289 = smul.addr %s288, 8
        %s290 = scalar_lea.vmem [#allocation5], %s289
        %p291 = pneg %p73
        %p292 = pneg %p70
        %p293 = pneg %p94
        %p294 = pneg %p91
        %p295 = pneg %p115
        %p296 = pneg %p112
        %p297 = pneg %p136
        %p298 = pneg %p133
        %p299 = pneg %p162
        %p300 = pneg %p159
        %s301 = sand.u32 %s149, 1
        %s302 = scalar_lea.sflag [#allocation4], %s301
        %s303 = sand.u32 %s149, 1
        %s304 = scalar_lea.vmem [#allocation10], %s303
        %v306 = vld [vmem:[%s258] sm:$0x1]
        %v307 = vld [vmem:[%s267] sm:$0xf]
        %v308 = vld [vmem:[%s267 + $0x4] sm:$0xf]
        %v309 = vld [vmem:[#allocation7] sm:$0xf]
        %v310 = vld [vmem:[#allocation7 + $0x4] sm:$0xf]
        %v311 = vld [vmem:[#allocation7 + $0x8] sm:$0xf]
        %v312 = vld [vmem:[#allocation7 + $0xc] sm:$0xf]
        %v313 = vld [vmem:[#allocation8] sm:$0xf]
        %v314 = vld [vmem:[#allocation8 + $0x4] sm:$0xf]
        %v315 = vld [vmem:[#allocation8 + $0x8] sm:$0xf]
        %v316 = vld [vmem:[#allocation8 + $0xc] sm:$0xf]
        %v317 = vld [vmem:[#allocation8 + $0x10] sm:$0xf]
        %v318 = vld [vmem:[#allocation8 + $0x14] sm:$0xf]
        %v319 = vld [vmem:[%s4] sm:$0x1]
        %v320 = vpack.c.bf16 %v306, %v306
        %v325 = vunpack.c.l.b16 %v309
        %v326 = vunpack.c.l.b16 %v310
        %v327 = vunpack.c.l.b16 %v311
        %v328 = vunpack.c.l.b16 %v312
        %v329 = vpack.c.b16 %v326, %v325
        %v330 = vpack.c.b16 %v328, %v327
        %vm333 = vcmask 261120
        %v335 = vsel %vm333, %v320, 0
        %337 = vmatprep.subr.bf16.mxu0 0
        %338 = vmatpush1.bf16.msra.mxu0 0
        %339 = vmatprep.subr.bf16.mxu0 0
        %340 = vmatpush1.bf16.msra.mxu0 0
        %341 = vmatprep.subr.bf16.mxu0 0
        %342 = vmatpush1.bf16.msra.mxu0 0
        %343 = vmatprep.subr.bf16.mxu0 0
        %344 = vmatpush1.bf16.msra.mxu0 0
        %345 = vmatprep.subr.bf16.mxu0 0
        %346 = vmatpush1.bf16.msra.mxu0 0
        %347 = vmatprep.subr.bf16.mxu0 0
        %348 = vmatpush1.bf16.msra.mxu0 0
        %349 = vmatprep.subr.bf16.mxu0 0
        %350 = vmatpush1.bf16.msra.mxu0 %v330
        %351 = vmatprep.subr.bf16.mxu0 0
        %352 = vmatpush1.bf16.msra.mxu0 %v329
        %353 = vmatprep.subr.bf16.mxu0 0
        %354 = vmatpush2.bf16.msra.mxu0 0
        %355 = vmatprep.subr.bf16.mxu0 0
        %356 = vmatpush2.bf16.msra.mxu0 0
        %357 = vmatprep.subr.bf16.mxu0 0
        %358 = vmatpush2.bf16.msra.mxu0 0
        %359 = vmatprep.subr.bf16.mxu0 0
        %360 = vmatpush2.bf16.msra.mxu0 0
        %361 = vmatprep.subr.bf16.mxu0 0
        %362 = vmatpush2.bf16.msra.mxu0 0
        %363 = vmatprep.subr.bf16.mxu0 0
        %364 = vmatpush2.bf16.msra.mxu0 0
        %365 = vmatprep.subr.bf16.mxu0 0
        %366 = vmatpush2.bf16.msra.mxu0 0
        %367 = vmatprep.subr.bf16.mxu0 0
        %368 = vmatpush2.bf16.msra.mxu0 0
        %369 = vmatprep.mubr.bf16.mxu0 0
        %370 = vmatmul.mubr.bf16.gmra.mxu0 %v335
        %v371 = vpop.f32.mrf.mxu0
        %v372 = vadd.f32 0.0, %v371
        %v373 = vpop.f32.mrf.mxu0
        %v374 = vpop.f32.mrf.mxu0
        %v375 = vpop.f32.mrf.mxu0
        %376 = vdwg.mxu0
        %v379 = vunpack.c.l.b16 %v307
        %v380 = vunpack.c.l.b16 %v308
        %v381 = vpack.c.b16 %v380, %v379
        %v388 = vunpack.c.l.b16 %v313
        %v389 = vunpack.c.l.b16 %v314
        %v390 = vunpack.c.l.b16 %v315
        %v391 = vunpack.c.l.b16 %v316
        %v392 = vunpack.c.l.b16 %v317
        %v393 = vunpack.c.l.b16 %v318
        %v394 = vpack.c.b16 %v389, %v388
        %v395 = vpack.c.b16 %v391, %v390
        %v396 = vpack.c.b16 %v393, %v392
        %vm400 = vcmask 392192
        %v402 = vsel %vm400, %v381, 0
        %404 = vmatprep.subr.bf16.mxu0 0
        %405 = vmatpush1.bf16.msra.mxu0 0
        %406 = vmatprep.subr.bf16.mxu0 0
        %407 = vmatpush1.bf16.msra.mxu0 0
        %408 = vmatprep.subr.bf16.mxu0 0
        %409 = vmatpush1.bf16.msra.mxu0 0
        %410 = vmatprep.subr.bf16.mxu0 0
        %411 = vmatpush1.bf16.msra.mxu0 0
        %412 = vmatprep.subr.bf16.mxu0 0
        %413 = vmatpush1.bf16.msra.mxu0 0
        %414 = vmatprep.subr.bf16.mxu0 0
        %415 = vmatpush1.bf16.msra.mxu0 %v396
        %416 = vmatprep.subr.bf16.mxu0 0
        %417 = vmatpush1.bf16.msra.mxu0 %v395
        %418 = vmatprep.subr.bf16.mxu0 0
        %419 = vmatpush1.bf16.msra.mxu0 %v394
        %420 = vmatprep.subr.bf16.mxu0 0
        %421 = vmatpush2.bf16.msra.mxu0 0
        %422 = vmatprep.subr.bf16.mxu0 0
        %423 = vmatpush2.bf16.msra.mxu0 0
        %424 = vmatprep.subr.bf16.mxu0 0
        %425 = vmatpush2.bf16.msra.mxu0 0
        %426 = vmatprep.subr.bf16.mxu0 0
        %427 = vmatpush2.bf16.msra.mxu0 0
        %428 = vmatprep.subr.bf16.mxu0 0
        %429 = vmatpush2.bf16.msra.mxu0 0
        %430 = vmatprep.subr.bf16.mxu0 0
        %431 = vmatpush2.bf16.msra.mxu0 0
        %432 = vmatprep.subr.bf16.mxu0 0
        %433 = vmatpush2.bf16.msra.mxu0 0
        %434 = vmatprep.subr.bf16.mxu0 0
        %435 = vmatpush2.bf16.msra.mxu0 0
        %436 = vmatprep.mubr.bf16.mxu0 0
        %437 = vmatmul.mubr.bf16.gmra.mxu0 %v402
        %v438 = vpop.f32.mrf.mxu0
        %v439 = vadd.f32 0.0, %v438
        %v440 = vpop.f32.mrf.mxu0
        %v441 = vpop.f32.mrf.mxu0
        %v442 = vadd.f32 0.0, %v441
        %v443 = vpop.f32.mrf.mxu0
        %444 = vdwg.mxu0
        %v445 = vlaneseq
        %v446 = vshrl.u32 %v445, 7
        %v447 = vsub.s32 0, %v446
        %v448 = vrot.slane %v372, %v447
        %v449 = vadd.f32 %v439, %v448
        %v450 = vadd.f32 %v442, %v448
        %v451 = vtanh.pop %v449
        %v452 = vtanh.pop %v450
        %v454 = vlaneseq
        %v455 = vshrl.u32 %v454, 7
        %v456 = vsub.s32 0, %v455
        %v457 = vrot.slane %v319, %v456
        %v459 = vmul.f32 %v451, %v457
        %v460 = vmul.f32 %v452, %v457
        %461 = vadd.xlane.f32.xlu0 %v459
        %v462 = vpop.xlane.xlu0 %461
        %463 = vadd.xlane.f32.xlu0 %v460
        %v464 = vpop.xlane.xlu0 %463
        %v465 = vlaneseq
        %v466 = vand.u32 %v465, 127
        %vm467 = vcmp.lt.s32.totalorder %v466, 10
        %v470 = vlaneseq
        %v471 = vshrl.u32 %v470, 7
        %v472 = vsub.s32 %v466, %v471
        %v473 = vrot.slane %v462, %v472
        %v474 = vadd.s32 %v466, 4294967288
        %v475 = vlaneseq
        %v476 = vshrl.u32 %v475, 7
        %v477 = vsub.s32 %v474, %v476
        %v478 = vrot.slane %v464, %v477
        %vm479 = vcmask 130112
        %v480 = vsel %vm479, %v478, %v473
        %v482 = vsel %vm467, %v480, -1e+30
        %vm483 = vcmask 122880
        %v484 = vsel %vm483, %v482, -inf
        %485 = vmax.xlane.f32.xlu0 %v484
        %v486 = vpop.xlane.xlu0 %485
        %v487 = vsub.f32 %v482, %v486
        %v488 = vmul.f32 %v487, 1.442695
        %v489 = vpow.pop %v488
        %v490 = vsel %vm483, %v489, 0.0
        %491 = vadd.xlane.f32.xlu0 %v490
        %v492 = vpop.xlane.xlu0 %491
        %v493 = vrcp.pop %v492
        %v494 = vmul.f32 %v489, %v493
        %v495 = vlaneseq
        %v496 = vshrl.u32 %v495, 7
        %v497 = vsub.s32 0, %v496
        %v498 = vrot.slane %v494, %v497
        %500 = vbcast.lane.b32.xlu0 %v498, 256
        %v501 = vpop.permute.xlu0 %500
        %s503 = sor.u32 256, 8
        %504 = vbcast.lane.b32.xlu0 %v498, %s503
        %v505 = vpop.permute.xlu0 %504
        %v506 = vunpack.c.l.bf16 %v307
        %v507 = vunpack.c.l.bf16 %v308
        %v508 = vmul.f32 %v501, %v506
        %v509 = vmul.f32 %v505, %v507
        %v510 = vsel %vm400, %v508, 0.0
        %v511 = vsel %vm400, %v509, 0.0
        %v512 = vadd.f32 %v510, %v511
        %v513 = vrot.slane %v512, 4
        %v514 = vadd.f32 %v512, %v513
        %v515 = vrot.slane %v514, 2
        %v516 = vadd.f32 %v514, %v515
        %v517 = vrot.slane %v516, 1
        %v518 = vadd.f32 %v516, %v517
        %vm519 = vcmask 385024
        %520 = vst.msk [vmem:[%s304] sm:$0x1] %vm519, %v518
        %s521 = sand.u32 %s149, 1
        %s522 = scalar_lea.sflag [#allocation4], %s521
        %s523 = sand.u32 %s149, 1
        %s524 = scalar_lea.vmem [#allocation10], %s523
        // Predicated region
        $region57: #{tpu_custom_call.1} parent=39 // pred_check
          %p525 = pneg %p159
        $region58: #{tpu_custom_call.1} parent=39 // pred_check_branch
          %527 = sbr.rel (%p525) target = $region60
        $region59: #{tpu_custom_call.1} parent=39 // pred_region
          %s529 = ssub.s32 16, 16
          %530 = vsyncadd %s522, %s529
          %s531 = smul.addr %s26, 16
          %s532 = scalar_lea.hbm %s5, %s531
          %s534 = sshll.u32 %s524, 4
          %s535 = int_to_ptr.vmem [resolvable:$true] %s534
          %537 = dma.vmem_to_hbm [thread:$0]  %s535, 16, %s532, %s522
        $region60: #{tpu_custom_call.1} parent=39 // pred_fallthru
          _
      $region40: #{tpu_custom_call.1} parent=5 // pred_fallthru
        _
      %p538 = scmp.le.s32.totalorder 2, %s21
      // Predicated region
      $region61: #{tpu_custom_call.1} parent=5 // pred_check
        %p539 = pneg %p538
      $region62: #{tpu_custom_call.1} parent=5 // pred_check_branch
        %541 = sbr.rel (%p539) target = $region64
      $region63: #{tpu_custom_call.1} parent=5 // pred_region
        %s542 = ssub.s32 %s21, 2
        // Predicated region
        $region65: #{tpu_custom_call.1} parent=63 // pred_check
          %p543 = pneg %p165
        $region66: #{tpu_custom_call.1} parent=63 // pred_check_branch
          %545 = sbr.rel (%p543) target = $region68
        $region67: #{tpu_custom_call.1} parent=63 // pred_region
          %s546 = sand.u32 %s150, 1
          %s547 = scalar_lea.sflag [#allocation4], %s546
          %s548 = sand.u32 %s150, 1
          %s549 = scalar_lea.vmem [#allocation10], %s548
          %550 = dma.done %s547, 16
        $region68: #{tpu_custom_call.1} parent=63 // pred_fallthru
          _
      $region64: #{tpu_custom_call.1} parent=5 // pred_fallthru
        _
    $region6: #{tpu_custom_call.1} parent=1 // loop_footer
      %s25 = sadd.s32 1, %s21
    $region7: #{tpu_custom_call.1} parent=1 // loop_footer_branch
      %20 = sbr.rel target = $region3
    $region8: #{tpu_custom_call.1} parent=1 // loop_exit
      _
    %551 = vsyncpa [#allocation3], 1
    %s552 = scalar_lea.sflag [#allocation3], 1
    %553 = vsyncpa %s552, 1
    %554 = vsyncpa [#allocation6], 1
    %s555 = scalar_lea.sflag [#allocation6], 1
    %556 = vsyncpa %s555, 1
    %557 = vsyncpa [#allocation9], 1
    %558 = vsyncpa [#allocation4], 1
    %s559 = scalar_lea.sflag [#allocation4], 1
    %560 = vsyncpa %s559, 1

</llo_original>
